<compile_context>
chip_gen: v6e
topology: v6e:2x2x1
jax: 0.10.0
libtpu: 0.0.40
codegen_flags: <defaults>
</compile_context>

<pallas_src>
import jax
import jax.numpy as jnp
from jax.experimental import pallas as pl
from jax.experimental.pallas import tpu as pltpu


def _decay_mean_pool_kernel(tok_ref, w_ref, decay_ref, out_ref, acc_ref):
    # tok_ref:   (TB, TS, TD)   native dtype (f32 / bf16)
    # w_ref:     (TB, TS)       mask / sum(mask), native dtype
    # decay_ref: (1, TD)        f32, decay ** arange(D) slice
    # out_ref:   (TB, TD)       output dtype
    # acc_ref:   (TB, 1, TD)    f32 accumulator scratch (resident over S tiles)
    si = pl.program_id(2)

    @pl.when(si == 0)
    def _init():
        acc_ref[...] = jnp.zeros_like(acc_ref)

    # Masked-mean contribution of this sequence tile as a batched
    # (TB,1,TS) x (TB,TS,TD) contraction -> MXU, f32 accumulate.  This keeps
    # the VPU off the critical path at v7x HBM bandwidth and consumes the
    # weights in their natural (TB, TS) layout (no lane broadcast).
    w = w_ref[...][:, None, :]                                   # (TB, 1, TS)
    acc_ref[...] += jnp.einsum(
        "bqs,bsd->bqd", w, tok_ref[...],
        preferred_element_type=jnp.float32)                      # (TB, 1, TD)

    @pl.when(si == pl.num_programs(2) - 1)
    def _finalize():
        sent = acc_ref[:, 0, :]                                  # (TB, TD) f32
        out_ref[...] = (sent * decay_ref[...]).astype(out_ref.dtype)


def _largest_aligned_divisor(dim, cap, align):
    """Largest multiple of `align` that divides `dim` and is <= cap (or None)."""
    if dim % align != 0:
        return None
    t = min(cap, dim)
    t -= t % align
    while t >= align:
        if dim % t == 0:
            return t
        t -= align
    return None


def decay_mean_pooling(token_embeddings: jax.Array,
                       attention_mask: jax.Array,
                       decay: float = 0.95,
                       block_b: int = 8,
                       block_s: int = 512,
                       block_d: int = 512,
                       max_buffer_bytes: int = 4 * 1024 * 1024,
                       vmem_limit_bytes: int | None = None) -> jax.Array:
    """JAX/Pallas equivalent of DecayMeanPooling.forward.

    token_embeddings: (B, S, D), any float dtype (streamed in native dtype)
    attention_mask:   (B, S), 0/1, any numeric dtype
    returns sentence_embedding: (B, D) in token_embeddings.dtype
    """
    B, S, D = token_embeddings.shape
    dtype = token_embeddings.dtype
    itemsize = jnp.dtype(dtype).itemsize

    # ---- fold the mean normalizer into the mask (one (B,S) weights input) ---
    mask_f32 = attention_mask.astype(jnp.float32)                  # (B, S)
    denom = jnp.sum(mask_f32, axis=1, keepdims=True)               # (B, 1)
    # NOTE: no clamp, matching the PyTorch module (all-zero mask rows -> NaN,
    # exactly as torch's 0/0 would produce).
    weights = (mask_f32 / denom).astype(dtype)                     # (B, S)

    decay_vec = (decay ** jnp.arange(D, dtype=jnp.float32)).reshape(1, D)

    # ---- batch tiling: multiples of 8, zero-pad B when it doesn't divide ----
    if B <= block_b:
        TB, B_pad = B, B
    else:
        TB = max(8, (block_b // 8) * 8)
        B_pad = int(pl.cdiv(B, TB)) * TB

    # ---- feature tiling: multiples of 128 dividing D (full D if not mult.) --
    TD = _largest_aligned_divisor(D, block_d, 128)
    if TD is None:
        TD = D  # small / odd D (e.g. spec test D=32): take the full axis.
    # Shrink TD first if even a minimal (TB, 128, TD) slab busts the budget.
    if TD % 128 == 0:
        while TB * 128 * TD * itemsize > max_buffer_bytes and TD > 128:
            nxt = _largest_aligned_divisor(D, TD - 128, 128)
            if nxt is None:
                break
            TD = nxt

    # ---- sequence tiling: multiples of 128, zero-pad S when needed ----------
    ts_cap = min(block_s, max(128, max_buffer_bytes // max(1, TB * TD * itemsize)))
    ts_cap = max(128, ts_cap - ts_cap % 128)
    if S <= ts_cap:
        TS, S_pad = S, S
    else:
        TS = ts_cap
        S_pad = int(pl.cdiv(S, TS)) * TS

    # ---- zero-mask padding (exact: padded positions/rows contribute 0) ------
    pad_b, pad_s = B_pad - B, S_pad - S
    tok = token_embeddings
    if pad_b or pad_s:
        tok = jnp.pad(tok, ((0, pad_b), (0, pad_s), (0, 0)))
        weights = jnp.pad(weights, ((0, pad_b), (0, pad_s)))

    grid = (B_pad // TB, D // TD, S_pad // TS)

    cp_kwargs = dict(dimension_semantics=("parallel", "parallel", "arbitrary"))
    if vmem_limit_bytes is not None:
        cp_kwargs["vmem_limit_bytes"] = int(vmem_limit_bytes)

    out = pl.pallas_call(
        _decay_mean_pool_kernel,
        out_shape=jax.ShapeDtypeStruct((B_pad, D), dtype),
        grid_spec=pltpu.PrefetchScalarGridSpec(
            num_scalar_prefetch=0,
            grid=grid,
            in_specs=[
                pl.BlockSpec((TB, TS, TD), lambda b, d, s: (b, s, d)),  # tokens
                pl.BlockSpec((TB, TS), lambda b, d, s: (b, s)),         # weights
                pl.BlockSpec((1, TD), lambda b, d, s: (0, d)),          # decay
            ],
            out_specs=pl.BlockSpec((TB, TD), lambda b, d, s: (b, d)),
            scratch_shapes=[pltpu.VMEM((TB, 1, TD), jnp.float32)],
        ),
        compiler_params=pltpu.CompilerParams(**cp_kwargs),
    )(tok, weights, decay_vec)

    return out[:B] if pad_b else out


def _reference(token_embeddings, attention_mask, decay=0.95):
    tok = token_embeddings.astype(jnp.float32)
    mask = attention_mask.astype(jnp.float32)[..., None]
    summed = (tok * mask).sum(axis=1)
    denom = mask.sum(axis=1)
    sent = summed / denom
    D = tok.shape[-1]
    return sent * (decay ** jnp.arange(D, dtype=jnp.float32))


if __name__ == "__main__":
    key = jax.random.PRNGKey(0)
    k1, k2 = jax.random.split(key)

    # --- Small spec-sized case: B=2, S=8, D=32, f32, single block (1,1,1). ---
    B, S, D = 2, 8, 32
    tok = jax.random.normal(k1, (B, S, D), dtype=jnp.float32)
    lengths = jnp.array([8, 5], dtype=jnp.int32)
    mask = (jnp.arange(S)[None, :] < lengths[:, None]).astype(jnp.int32)

    out = jax.block_until_ready(decay_mean_pooling(tok, mask, decay=0.95))
    ref = _reference(tok, mask, decay=0.95)
    assert out.shape == (B, D)
    assert jnp.allclose(out, ref, atol=5e-3, rtol=5e-3)

    # --- Larger bf16 case exercising B/D/S tiling plus zero-padding:
    #     B=10 -> padded 16 (TB=8), D=256 (TD=128), S=640 -> padded 1024
    #     (TS=512), grid = (2, 2, 2). ---
    B2, S2, D2 = 10, 640, 256
    tok2 = jax.random.normal(k2, (B2, S2, D2), dtype=jnp.float32).astype(
        jnp.bfloat16)
    lengths2 = jnp.arange(1, B2 + 1, dtype=jnp.int32) * (S2 // B2)
    mask2 = (jnp.arange(S2)[None, :] < lengths2[:, None]).astype(jnp.int32)

    out2 = jax.block_until_ready(
        decay_mean_pooling(tok2, mask2, decay=0.95,
                           block_b=8, block_s=512, block_d=128))
    ref2 = _reference(tok2, mask2, decay=0.95)
    assert out2.shape == (B2, D2)
    assert jnp.allclose(out2.astype(jnp.float32), ref2, atol=3e-2, rtol=3e-2)

    print("KERNEL_OK")
</pallas_src>

<mosaic_0001>
module attributes {stable_mosaic.version = 11 : i64} {
  func.func @_decay_mean_pool_kernel(%arg0: i32, %arg1: i32, %arg2: i32, %arg3: memref<2x8x32xf32, #tpu.memory_space<vmem>>, %arg4: memref<2x8xf32, #tpu.memory_space<vmem>>, %arg5: memref<1x32xf32, #tpu.memory_space<vmem>>, %arg6: memref<2x32xf32, #tpu.memory_space<vmem>>, %arg7: memref<2x1x32xf32, #tpu.memory_space<vmem>>) attributes {dimension_semantics = [#tpu.dimension_semantics<parallel>, #tpu.dimension_semantics<parallel>, #tpu.dimension_semantics<arbitrary>], iteration_bounds = array<i64: 1, 1, 1>, scalar_prefetch = 0 : i64, scratch_operands = 1 : i64, tpu.core_type = #tpu.core_type<tc>, window_params = [{transform_indices = @transform_0, window_bounds = array<i64: 2, 8, 32>}, {transform_indices = @transform_1, window_bounds = array<i64: 2, 8>}, {transform_indices = @transform_2, window_bounds = array<i64: 1, 32>}, {transform_indices = @transform_3, window_bounds = array<i64: 2, 32>}]} {
    %c0_i32 = arith.constant 0 : i32
    %0 = arith.cmpi eq, %arg2, %c0_i32 : i32
    %1 = arith.extui %0 : i1 to i32
    %c0_i32_0 = arith.constant 0 : i32
    %2 = arith.cmpi ne, %1, %c0_i32_0 : i32
    scf.if %2 {
      %cst_13 = arith.constant 0.000000e+00 : f32
      %13 = vector.broadcast %cst_13 : f32 to vector<2x1x32xf32>
      %c0_14 = arith.constant 0 : index
      %c0_15 = arith.constant 0 : index
      %c0_16 = arith.constant 0 : index
      %14 = vector.load %arg7[%c0_14, %c0_15, %c0_16] : memref<2x1x32xf32, #tpu.memory_space<vmem>>, vector<2x1x32xf32>
      tpu.vector_store %arg7[%c0_14, %c0_15, %c0_16], %13 {strides = array<i32>} : memref<2x1x32xf32, #tpu.memory_space<vmem>>, vector<2x1x32xf32>,
    } else {
    }
    %c0 = arith.constant 0 : index
    %c0_1 = arith.constant 0 : index
    %3 = vector.load %arg4[%c0, %c0_1] : memref<2x8xf32, #tpu.memory_space<vmem>>, vector<2x8xf32>
    %4 = vector.shape_cast %3 : vector<2x8xf32> to vector<2x1x8xf32>
    %c0_2 = arith.constant 0 : index
    %c0_3 = arith.constant 0 : index
    %c0_4 = arith.constant 0 : index
    %5 = vector.load %arg7[%c0_2, %c0_3, %c0_4] : memref<2x1x32xf32, #tpu.memory_space<vmem>>, vector<2x1x32xf32>
    %c0_5 = arith.constant 0 : index
    %c0_6 = arith.constant 0 : index
    %c0_7 = arith.constant 0 : index
    %6 = vector.load %arg3[%c0_5, %c0_6, %c0_7] : memref<2x8x32xf32, #tpu.memory_space<vmem>>, vector<2x8x32xf32>
    "tpu.trace_start"() <{level = 10 : i32, message = "bqs,bsd->bqd"}> : () -> ()
    %cst = arith.constant dense<0.000000e+00> : vector<2x1x32xf32>
    %7 = tpu.matmul %4, %6, %cst {dimension_numbers = #tpu.dot_dimension_numbers<[2], [1], [1], [2], [0, 0, 0, 1, 1, 2], [0], [0]>} : vector<2x1x8xf32>, vector<2x8x32xf32>, vector<2x1x32xf32> -> vector<2x1x32xf32>
    "tpu.trace_stop"() : () -> ()
    %8 = arith.addf %5, %7 : vector<2x1x32xf32>
    %c0_8 = arith.constant 0 : index
    %c0_9 = arith.constant 0 : index
    %c0_10 = arith.constant 0 : index
    %9 = vector.load %arg7[%c0_8, %c0_9, %c0_10] : memref<2x1x32xf32, #tpu.memory_space<vmem>>, vector<2x1x32xf32>
    tpu.vector_store %arg7[%c0_8, %c0_9, %c0_10], %8 {strides = array<i32>} : memref<2x1x32xf32, #tpu.memory_space<vmem>>, vector<2x1x32xf32>,
    %c0_i32_11 = arith.constant 0 : i32
    %10 = arith.cmpi eq, %arg2, %c0_i32_11 : i32
    %11 = arith.extui %10 : i1 to i32
    %c0_i32_12 = arith.constant 0 : i32
    %12 = arith.cmpi ne, %11, %c0_i32_12 : i32
    scf.if %12 {
      %c0_13 = arith.constant 0 : index
      %c0_14 = arith.constant 0 : index
      %c0_15 = arith.constant 0 : index
      %13 = vector.load %arg7[%c0_13, %c0_14, %c0_15] : memref<2x1x32xf32, #tpu.memory_space<vmem>>, vector<2x1x32xf32>
      %14 = vector.shape_cast %13 : vector<2x1x32xf32> to vector<2x32xf32>
      %c0_16 = arith.constant 0 : index
      %c0_17 = arith.constant 0 : index
      %15 = vector.load %arg5[%c0_16, %c0_17] : memref<1x32xf32, #tpu.memory_space<vmem>>, vector<1x32xf32>
      %16 = vector.broadcast %15 : vector<1x32xf32> to vector<2x32xf32>
      %17 = arith.mulf %14, %16 : vector<2x32xf32>
      %c0_18 = arith.constant 0 : index
      %c0_19 = arith.constant 0 : index
      %18 = vector.load %arg6[%c0_18, %c0_19] : memref<2x32xf32, #tpu.memory_space<vmem>>, vector<2x32xf32>
      tpu.vector_store %arg6[%c0_18, %c0_19], %17 {strides = array<i32>} : memref<2x32xf32, #tpu.memory_space<vmem>>, vector<2x32xf32>,
    } else {
    }
    return
  }
  func.func @transform_0(%arg0: i32, %arg1: i32, %arg2: i32) -> (i32, i32, i32) {
    %c0_i32 = arith.constant 0 : i32
    return %arg0, %arg2, %arg1 : i32, i32, i32
  }
  func.func @transform_1(%arg0: i32, %arg1: i32, %arg2: i32) -> (i32, i32) {
    %c0_i32 = arith.constant 0 : i32
    return %arg0, %arg2 : i32, i32
  }
  func.func @transform_2(%arg0: i32, %arg1: i32, %arg2: i32) -> (i32, i32) {
    %c0_i32 = arith.constant 0 : i32
    %c0_i32_0 = arith.constant 0 : i32
    return %c0_i32, %arg1 : i32, i32
  }
  func.func @transform_3(%arg0: i32, %arg1: i32, %arg2: i32) -> (i32, i32) {
    %c0_i32 = arith.constant 0 : i32
    return %arg0, %arg1 : i32, i32
  }
}

</mosaic_0001>

<llo_original>
// kernel: tpu_custom_call.1
$region0: #{tpu_custom_call.1}
  #allocation0 [shape = 'u32[]', space=smem, size = 0x4, offset = 0x4, fixed_abs, tag = 'smem constant byte address 0x4 - core index']
  #allocation1 [shape = 'u32[144,128]{1,0:T(1,128)}', space=vmem, size = 0x12000, scoped, tag = 'internal scratch']
  #allocation2 [shape = 'f32[2,1,32]{2,1,0:T(1,128)}', space=vmem, size = 0x400, scoped, tag = 'scratch operand']
  %s0 = inlined_call_operand.hbm [shape: f32[2,8,32], index: 0, kind: input, shape index: {}]
  %s1 = inlined_call_operand.hbm [shape: f32[2,8], index: 1, kind: input, shape index: {}]
  %s2 = inlined_call_operand.vmem [shape: f32[1,32], index: 2, kind: input, shape index: {}]
  %s3 = inlined_call_operand.hbm [shape: f32[2,32], index: 3, kind: output, shape index: {}]
  %s4 = sld [smem:[#allocation0]]
  $region38: #{tpu_custom_call.1} parent=0
    _
  %s6 = ssub.s32 1, %s4
  %s7 = scalar_select 0, %s6, %s4
  $region1: #{tpu_custom_call.1} parent=0
    #allocation3 [shape = 'u8[8192]{0}', space=vmem, size = 0x2000, scoped, tag = 'input window, operand 0, single buffered']
    #allocation4 [shape = 's32[1]{0}', space=sflag, size = 0x4, scoped, tag = 'scoped memory for tpu_custom_call.1']
    #allocation5 [shape = 's32[1]{0}', space=sflag, size = 0x4, scoped, tag = 'scoped memory for tpu_custom_call.1']
    #allocation6 [shape = 'u8[1024]{0}', space=vmem, size = 0x400, scoped, tag = 'input window, operand 1, single buffered']
    #allocation7 [shape = 's32[1]{0}', space=sflag, size = 0x4, scoped, tag = 'scoped memory for tpu_custom_call.1']
    #allocation8 [shape = 'u8[1024]{0}', space=vmem, size = 0x400, scoped, tag = 'output window, operand 0, single buffered']
    %8 = vsyncpa [#allocation4], 0
    %9 = vsyncpa [#allocation7], 0
    %10 = vsyncpa [#allocation5], 0
    // Predicated region
    $region2: #{tpu_custom_call.1} parent=1 // pred_check
      _
    $region3: #{tpu_custom_call.1} parent=1 // pred_check_branch
      %12 = sbr.rel (0) target = $region5
    $region4: #{tpu_custom_call.1} parent=1 // pred_region
      %s14 = ssub.s32 256, 256
      %15 = vsyncadd [#allocation4], %s14
      %s16 = sshll.u32 [#allocation3], 4
      %s17 = int_to_ptr.vmem [resolvable:$true] %s16
      %22 = dma.hbm_to_vmem [thread:$0]  %s0, 256, %s17, [#allocation4], 128, 128, 8
    $region5: #{tpu_custom_call.1} parent=1 // pred_fallthru
      _
    // Predicated region
    $region6: #{tpu_custom_call.1} parent=1 // pred_check
      _
    $region7: #{tpu_custom_call.1} parent=1 // pred_check_branch
      %24 = sbr.rel (0) target = $region9
    $region8: #{tpu_custom_call.1} parent=1 // pred_region
      %s26 = ssub.s32 32, 32
      %27 = vsyncadd [#allocation7], %s26
      %s29 = sshll.u32 [#allocation6], 4
      %s30 = int_to_ptr.vmem [resolvable:$true] %s29
      %32 = dma.hbm_to_vmem [thread:$0]  %s1, 32, %s30, [#allocation7]
    $region9: #{tpu_custom_call.1} parent=1 // pred_fallthru
      _
    // Predicated region
    $region10: #{tpu_custom_call.1} parent=1 // pred_check
      _
    $region11: #{tpu_custom_call.1} parent=1 // pred_check_branch
      %34 = sbr.rel (0) target = $region13
    $region12: #{tpu_custom_call.1} parent=1 // pred_region
      _
    $region13: #{tpu_custom_call.1} parent=1 // pred_fallthru
      _
    // Predicated region
    $region14: #{tpu_custom_call.1} parent=1 // pred_check
      _
    $region15: #{tpu_custom_call.1} parent=1 // pred_check_branch
      %36 = sbr.rel (0) target = $region17
    $region16: #{tpu_custom_call.1} parent=1 // pred_region
      %37 = dma.done [#allocation4], 256
    $region17: #{tpu_custom_call.1} parent=1 // pred_fallthru
      _
    // Predicated region
    $region18: #{tpu_custom_call.1} parent=1 // pred_check
      _
    $region19: #{tpu_custom_call.1} parent=1 // pred_check_branch
      %39 = sbr.rel (0) target = $region21
    $region20: #{tpu_custom_call.1} parent=1 // pred_region
      %40 = dma.done [#allocation7], 32
    $region21: #{tpu_custom_call.1} parent=1 // pred_fallthru
      _
    %p41 = scmp.eq.s32.totalorder 0, 0
    // Predicated region
    $region22: #{tpu_custom_call.1} parent=1 // pred_check
      %p42 = pneg %p41
    $region23: #{tpu_custom_call.1} parent=1 // pred_check_branch
      %44 = sbr.rel (%p42) target = $region25
    $region24: #{tpu_custom_call.1} parent=1 // pred_region
      %vm45 = vcmask 253952
      %46 = vst.msk [vmem:[#allocation2] sm:$0x1] %vm45, 0.0
      %47 = vst.msk [vmem:[#allocation2 + $0x1] sm:$0x1] %vm45, 0.0
    $region25: #{tpu_custom_call.1} parent=1 // pred_fallthru
      _
    %v48 = vld [vmem:[#allocation6] sm:$0x3]
    %v51 = vunpack.c.l.s4 1966171168
    %v52 = vunpack.c.0.s8 %v51
    %v53 = vlaneseq
    %v54 = vshrl.u32 %v53, 7
    %v55 = vsub.s32 %v52, %v54
    %v56 = vrot.slane %v48, %v55
    %v57 = vcombine.high %v56, %v56
    %v59 = vunpack.c.l.s4 1966171168
    %v60 = vunpack.c.0.s8 %v59
    %v61 = vlaneseq
    %v62 = vshrl.u32 %v61, 7
    %v63 = vsub.s32 %v60, %v62
    %v64 = vrot.slane %v56, %v63
    %v66 = vunpack.c.l.s4 1966171168
    %v67 = vunpack.c.0.s8 %v66
    %v68 = vlaneseq
    %v69 = vshrl.u32 %v68, 7
    %v70 = vsub.s32 %v67, %v69
    %v71 = vrot.slane %v57, %v70
    %v72 = vld [vmem:[#allocation2] sm:$0x1]
    %v73 = vld [vmem:[#allocation2 + $0x1] sm:$0x1]
    %v74 = vld [vmem:[#allocation3] sm:$0xff]
    %v75 = vld [vmem:[#allocation3 + $0x8] sm:$0xff]
    %vm76 = vcmask 64512
    %v77 = vsel %vm76, %v64, 0
    %79 = vmatprep.subr.mxu0 0.0
    %80 = vmatpush1.msra.mxu0 0.0
    %81 = vmatprep.subr.mxu0 0.0
    %82 = vmatpush1.msra.mxu0 0.0
    %83 = vmatprep.subr.mxu0 0.0
    %84 = vmatpush1.msra.mxu0 0.0
    %85 = vmatprep.subr.mxu0 0.0
    %86 = vmatpush1.msra.mxu0 0.0
    %87 = vmatprep.subr.mxu0 0.0
    %88 = vmatpush1.msra.mxu0 0.0
    %89 = vmatprep.subr.mxu0 0.0
    %90 = vmatpush1.msra.mxu0 0.0
    %91 = vmatprep.subr.mxu0 0.0
    %92 = vmatpush1.msra.mxu0 0.0
    %93 = vmatprep.subr.mxu0 0.0
    %94 = vmatpush1.msra.mxu0 0.0
    %95 = vmatprep.subr.mxu0 0.0
    %96 = vmatpush1.msra.mxu0 0.0
    %97 = vmatprep.subr.mxu0 0.0
    %98 = vmatpush1.msra.mxu0 0.0
    %99 = vmatprep.subr.mxu0 0.0
    %100 = vmatpush1.msra.mxu0 0.0
    %101 = vmatprep.subr.mxu0 0.0
    %102 = vmatpush1.msra.mxu0 0.0
    %103 = vmatprep.subr.mxu0 0.0
    %104 = vmatpush1.msra.mxu0 0.0
    %105 = vmatprep.subr.mxu0 0.0
    %106 = vmatpush1.msra.mxu0 0.0
    %107 = vmatprep.subr.mxu0 0.0
    %108 = vmatpush1.msra.mxu0 0.0
    %109 = vmatprep.subr.mxu0 0.0
    %110 = vmatpush1.msra.mxu0 %v74
    %111 = vmatprep.subr.mxu0 0.0
    %112 = vmatpush2.msra.mxu0 0.0
    %113 = vmatprep.subr.mxu0 0.0
    %114 = vmatpush2.msra.mxu0 0.0
    %115 = vmatprep.subr.mxu0 0.0
    %116 = vmatpush2.msra.mxu0 0.0
    %117 = vmatprep.subr.mxu0 0.0
    %118 = vmatpush2.msra.mxu0 0.0
    %119 = vmatprep.subr.mxu0 0.0
    %120 = vmatpush2.msra.mxu0 0.0
    %121 = vmatprep.subr.mxu0 0.0
    %122 = vmatpush2.msra.mxu0 0.0
    %123 = vmatprep.subr.mxu0 0.0
    %124 = vmatpush2.msra.mxu0 0.0
    %125 = vmatprep.subr.mxu0 0.0
    %126 = vmatpush2.msra.mxu0 0.0
    %127 = vmatprep.subr.mxu0 0.0
    %128 = vmatpush2.msra.mxu0 0.0
    %129 = vmatprep.subr.mxu0 0.0
    %130 = vmatpush2.msra.mxu0 0.0
    %131 = vmatprep.subr.mxu0 0.0
    %132 = vmatpush2.msra.mxu0 0.0
    %133 = vmatprep.subr.mxu0 0.0
    %134 = vmatpush2.msra.mxu0 0.0
    %135 = vmatprep.subr.mxu0 0.0
    %136 = vmatpush2.msra.mxu0 0.0
    %137 = vmatprep.subr.mxu0 0.0
    %138 = vmatpush2.msra.mxu0 0.0
    %139 = vmatprep.subr.mxu0 0.0
    %140 = vmatpush2.msra.mxu0 0.0
    %141 = vmatprep.subr.mxu0 0.0
    %142 = vmatpush2.msra.mxu0 0.0
    %143 = vmatprep.mubr.f32.mxu0 0.0
    %144 = vmatmul.mubr.f32.gmra.mxu0 %v77
    %v145 = vpop.f32.mrf.mxu0
    %v146 = vadd.f32 0.0, %v145
    %v147 = vpop.f32.mrf.mxu0
    %148 = vdwg.mxu0
    %v149 = vsel %vm76, %v71, 0
    %151 = vmatprep.subr.mxu0 0.0
    %152 = vmatpush1.msra.mxu0 0.0
    %153 = vmatprep.subr.mxu0 0.0
    %154 = vmatpush1.msra.mxu0 0.0
    %155 = vmatprep.subr.mxu0 0.0
    %156 = vmatpush1.msra.mxu0 0.0
    %157 = vmatprep.subr.mxu0 0.0
    %158 = vmatpush1.msra.mxu0 0.0
    %159 = vmatprep.subr.mxu0 0.0
    %160 = vmatpush1.msra.mxu0 0.0
    %161 = vmatprep.subr.mxu0 0.0
    %162 = vmatpush1.msra.mxu0 0.0
    %163 = vmatprep.subr.mxu0 0.0
    %164 = vmatpush1.msra.mxu0 0.0
    %165 = vmatprep.subr.mxu0 0.0
    %166 = vmatpush1.msra.mxu0 0.0
    %167 = vmatprep.subr.mxu0 0.0
    %168 = vmatpush1.msra.mxu0 0.0
    %169 = vmatprep.subr.mxu0 0.0
    %170 = vmatpush1.msra.mxu0 0.0
    %171 = vmatprep.subr.mxu0 0.0
    %172 = vmatpush1.msra.mxu0 0.0
    %173 = vmatprep.subr.mxu0 0.0
    %174 = vmatpush1.msra.mxu0 0.0
    %175 = vmatprep.subr.mxu0 0.0
    %176 = vmatpush1.msra.mxu0 0.0
    %177 = vmatprep.subr.mxu0 0.0
    %178 = vmatpush1.msra.mxu0 0.0
    %179 = vmatprep.subr.mxu0 0.0
    %180 = vmatpush1.msra.mxu0 0.0
    %181 = vmatprep.subr.mxu0 0.0
    %182 = vmatpush1.msra.mxu0 %v75
    %183 = vmatprep.subr.mxu0 0.0
    %184 = vmatpush2.msra.mxu0 0.0
    %185 = vmatprep.subr.mxu0 0.0
    %186 = vmatpush2.msra.mxu0 0.0
    %187 = vmatprep.subr.mxu0 0.0
    %188 = vmatpush2.msra.mxu0 0.0
    %189 = vmatprep.subr.mxu0 0.0
    %190 = vmatpush2.msra.mxu0 0.0
    %191 = vmatprep.subr.mxu0 0.0
    %192 = vmatpush2.msra.mxu0 0.0
    %193 = vmatprep.subr.mxu0 0.0
    %194 = vmatpush2.msra.mxu0 0.0
    %195 = vmatprep.subr.mxu0 0.0
    %196 = vmatpush2.msra.mxu0 0.0
    %197 = vmatprep.subr.mxu0 0.0
    %198 = vmatpush2.msra.mxu0 0.0
    %199 = vmatprep.subr.mxu0 0.0
    %200 = vmatpush2.msra.mxu0 0.0
    %201 = vmatprep.subr.mxu0 0.0
    %202 = vmatpush2.msra.mxu0 0.0
    %203 = vmatprep.subr.mxu0 0.0
    %204 = vmatpush2.msra.mxu0 0.0
    %205 = vmatprep.subr.mxu0 0.0
    %206 = vmatpush2.msra.mxu0 0.0
    %207 = vmatprep.subr.mxu0 0.0
    %208 = vmatpush2.msra.mxu0 0.0
    %209 = vmatprep.subr.mxu0 0.0
    %210 = vmatpush2.msra.mxu0 0.0
    %211 = vmatprep.subr.mxu0 0.0
    %212 = vmatpush2.msra.mxu0 0.0
    %213 = vmatprep.subr.mxu0 0.0
    %214 = vmatpush2.msra.mxu0 0.0
    %215 = vmatprep.mubr.f32.mxu0 0.0
    %216 = vmatmul.mubr.f32.gmra.mxu0 %v149
    %v217 = vpop.f32.mrf.mxu0
    %v218 = vadd.f32 0.0, %v217
    %v219 = vpop.f32.mrf.mxu0
    %220 = vdwg.mxu0
    %v221 = vadd.f32 %v72, %v146
    %v222 = vadd.f32 %v73, %v218
    %vm223 = vcmask 253952
    %224 = vst.msk [vmem:[#allocation2] sm:$0x1] %vm223, %v221
    %225 = vst.msk [vmem:[#allocation2 + $0x1] sm:$0x1] %vm223, %v222
    // Predicated region
    $region26: #{tpu_custom_call.1} parent=1 // pred_check
      %p226 = pneg %p41
    $region27: #{tpu_custom_call.1} parent=1 // pred_check_branch
      %228 = sbr.rel (%p226) target = $region29
    $region28: #{tpu_custom_call.1} parent=1 // pred_region
      %v229 = vld [vmem:[#allocation2] sm:$0x1]
      %v230 = vld [vmem:[#allocation2 + $0x1] sm:$0x1]
      %v231 = vld [vmem:[%s2] sm:$0x1]
      %v233 = vlaneseq
      %v234 = vshrl.u32 %v233, 7
      %v235 = vsub.s32 0, %v234
      %v236 = vrot.slane %v231, %v235
      %v238 = vunpack.c.l.s4 1966171168
      %v239 = vunpack.c.0.s8 %v238
      %v240 = vlaneseq
      %v241 = vshrl.u32 %v240, 7
      %v242 = vsub.s32 %v239, %v241
      %v243 = vrot.slane %v236, %v242
      %v244 = vcombine.high %v243, %v243
      %v246 = vunpack.c.l.s4 1966171168
      %v247 = vunpack.c.0.s8 %v246
      %v248 = vlaneseq
      %v249 = vshrl.u32 %v248, 7
      %v250 = vsub.s32 %v247, %v249
      %v251 = vrot.slane %v243, %v250
      %v253 = vunpack.c.l.s4 1966171168
      %v254 = vunpack.c.0.s8 %v253
      %v255 = vlaneseq
      %v256 = vshrl.u32 %v255, 7
      %v257 = vsub.s32 %v254, %v256
      %v258 = vrot.slane %v244, %v257
      %v261 = vmul.f32 %v229, %v251
      %v262 = vmul.f32 %v230, %v258
      %v265 = vcombine.low %v261, %v262
      %v267 = vunpack.c.l.s4 1966171168
      %v268 = vunpack.c.0.s8 %v267
      %v269 = vlaneseq
      %v270 = vshrl.u32 %v269, 7
      %v271 = vsub.s32 %v268, %v270
      %v272 = vrot.slane %v265, %v271
      %v274 = vunpack.c.l.s4 1966171168
      %v275 = vunpack.c.0.s8 %v274
      %v276 = vlaneseq
      %v277 = vshrl.u32 %v276, 7
      %v278 = vsub.s32 %v275, %v277
      %v279 = vrot.slane %v272, %v278
      %vm281 = vcmask 254976
      %282 = vst.msk [vmem:[#allocation8] sm:$0x3] %vm281, %v279
    $region29: #{tpu_custom_call.1} parent=1 // pred_fallthru
      _
    // Predicated region
    $region30: #{tpu_custom_call.1} parent=1 // pred_check
      _
    $region31: #{tpu_custom_call.1} parent=1 // pred_check_branch
      %284 = sbr.rel (0) target = $region33
    $region32: #{tpu_custom_call.1} parent=1 // pred_region
      %s286 = ssub.s32 32, 32
      %287 = vsyncadd [#allocation5], %s286
      %s289 = sshll.u32 [#allocation8], 4
      %s290 = int_to_ptr.vmem [resolvable:$true] %s289
      %292 = dma.vmem_to_hbm [thread:$0]  %s290, 32, %s3, [#allocation5]
    $region33: #{tpu_custom_call.1} parent=1 // pred_fallthru
      _
    // Predicated region
    $region34: #{tpu_custom_call.1} parent=1 // pred_check
      _
    $region35: #{tpu_custom_call.1} parent=1 // pred_check_branch
      %294 = sbr.rel (0) target = $region37
    $region36: #{tpu_custom_call.1} parent=1 // pred_region
      %295 = dma.done [#allocation5], 32
    $region37: #{tpu_custom_call.1} parent=1 // pred_fallthru
      _
    %296 = vsyncpa [#allocation4], 1
    %297 = vsyncpa [#allocation7], 1
    %298 = vsyncpa [#allocation5], 1

</llo_original>
